<compile_context>
chip_gen: v7x
topology: tpu7x:2x2x1
jax: 0.10.0
libtpu: 0.0.40
codegen_flags: <defaults>
</compile_context>

<pallas_src>
import functools

import jax
import jax.numpy as jnp
from jax import lax
from jax.experimental import pallas as pl
from jax.experimental.pallas import tpu as pltpu


def _round_up(a, m):
    return (a + m - 1) // m * m


def _vmem_limit_bytes(*tile_bytes):
    # Generous headroom over double-buffered tiles, capped well below v7x's
    # 64 MiB physical VMEM (also fine for v5e/v6e).
    need = 2 * sum(tile_bytes)
    return int(min(48 * 1024 * 1024, max(4 * 1024 * 1024, 2 * need)))


# ----------------------------------------------------------------------------
# Pallas kernel: fused  X @ W + b  [+ ReLU]   (bf16 MXU, f32 accumulate)
# ----------------------------------------------------------------------------
def _matmul_bias_kernel(x_ref, w_ref, b_ref, o_ref, *, relu):
    x = x_ref[...].astype(jnp.bfloat16)                 # bf16 into the MXU
    acc = jnp.dot(x, w_ref[...], preferred_element_type=jnp.float32)
    acc = acc + b_ref[...]                              # (1, N) broadcast, f32
    if relu:
        acc = jnp.maximum(acc, 0.0)
    o_ref[...] = acc.astype(o_ref.dtype)


def fused_matmul(x, w, b, *, relu, out_dtype=jnp.float32, tm=256):
    """relu?(x @ w + b). x:(M,K) bf16/f32, w:(K,N) bf16, b:(1,N) f32."""
    M, K = x.shape
    Kw, N = w.shape
    assert K == Kw, (K, Kw)
    # M tiles in multiples of 16 so bf16 blocks respect the (16,128) packing.
    tm = min(tm, _round_up(M, 16))
    Mp = _round_up(M, tm)
    if Mp != M:                                         # small ragged-M tail pad
        x = jnp.pad(x, ((0, Mp - M), (0, 0)))
    xb = x.itemsize
    limit = _vmem_limit_bytes(tm * K * xb, tm * N * 4, K * N * 2, N * 4)
    out = pl.pallas_call(
        functools.partial(_matmul_bias_kernel, relu=relu),
        out_shape=jax.ShapeDtypeStruct((Mp, N), out_dtype),
        grid=(Mp // tm,),
        in_specs=[
            pl.BlockSpec((tm, K), lambda i: (i, 0)),    # pipelined over M
            pl.BlockSpec((K, N), lambda i: (0, 0)),     # weights resident in VMEM
            pl.BlockSpec((1, N), lambda i: (0, 0)),
        ],
        out_specs=pl.BlockSpec((tm, N), lambda i: (i, 0)),
        compiler_params=pltpu.CompilerParams(
            dimension_semantics=("parallel",),          # megacore / v7x 2nd TC
            vmem_limit_bytes=limit,
        ),
    )(x, w, b)
    return out if Mp == M else out[:M]


# ----------------------------------------------------------------------------
# Pallas kernel: fused MLP head  relu(X @ W1 + b1) @ W2 + b2
# (hidden activation stays in VMEM -- no HBM round-trip, one kernel launch)
# ----------------------------------------------------------------------------
def _mlp_head_kernel(x_ref, w1_ref, b1_ref, w2_ref, b2_ref, o_ref):
    x = x_ref[...].astype(jnp.bfloat16)
    h = jnp.dot(x, w1_ref[...], preferred_element_type=jnp.float32)
    h = jnp.maximum(h + b1_ref[...], 0.0)               # fc1 + ReLU, f32, VMEM-resident
    o = jnp.dot(h.astype(jnp.bfloat16), w2_ref[...],
                preferred_element_type=jnp.float32)
    o_ref[...] = o + b2_ref[...]


def mlp_head(x, w1, b1, w2, b2, *, tm=256):
    M, K = x.shape
    N1 = w1.shape[1]
    N2 = w2.shape[1]
    tm = min(tm, _round_up(M, 16))
    Mp = _round_up(M, tm)
    if Mp != M:
        x = jnp.pad(x, ((0, Mp - M), (0, 0)))
    xb = x.itemsize
    limit = _vmem_limit_bytes(tm * K * xb, tm * N1 * 4, tm * N2 * 4,
                              K * N1 * 2, N1 * N2 * 2, (N1 + N2) * 4)
    out = pl.pallas_call(
        _mlp_head_kernel,
        out_shape=jax.ShapeDtypeStruct((Mp, N2), jnp.float32),
        grid=(Mp // tm,),
        in_specs=[
            pl.BlockSpec((tm, K), lambda i: (i, 0)),
            pl.BlockSpec((K, N1), lambda i: (0, 0)),
            pl.BlockSpec((1, N1), lambda i: (0, 0)),
            pl.BlockSpec((N1, N2), lambda i: (0, 0)),
            pl.BlockSpec((1, N2), lambda i: (0, 0)),
        ],
        out_specs=pl.BlockSpec((tm, N2), lambda i: (i, 0)),
        compiler_params=pltpu.CompilerParams(
            dimension_semantics=("parallel",),
            vmem_limit_bytes=limit,
        ),
    )(x, w1, b1, w2, b2)
    return out if Mp == M else out[:M]


# ----------------------------------------------------------------------------
# NHWC im2col glue (XLA): no transposes, channel-last concat, bf16 throughout.
# ----------------------------------------------------------------------------
def im2col_nhwc(x, kh, kw, stride, padding=0):
    """NHWC -> (N*OH*OW, kh*kw*C) patch matrix, K ordered (kh, kw, C)."""
    # TODO(synk): the patch gather is still XLA-side; an in-kernel gather over
    # (OH,OW) tiles of a VMEM-resident input would remove the duplicated
    # patch traffic in HBM.
    if padding:
        x = jnp.pad(x, ((0, 0), (padding, padding), (padding, padding), (0, 0)))
    N, H, W, C = x.shape
    OH = (H - kh) // stride + 1
    OW = (W - kw) // stride + 1
    cols = [
        x[:, i:i + stride * (OH - 1) + 1:stride,
             j:j + stride * (OW - 1) + 1:stride, :]
        for i in range(kh) for j in range(kw)
    ]
    p = jnp.concatenate(cols, axis=-1)                  # (N, OH, OW, kh*kw*C)
    return p.reshape(N * OH * OW, kh * kw * C), OH, OW


def conv_relu_nhwc(x, w, b, *, kh, kw, stride, padding=0):
    """Conv2d + bias + ReLU, NHWC bf16 in / NHWC bf16 out. w:(kh*kw*C_in, C_out)."""
    patches, OH, OW = im2col_nhwc(x, kh, kw, stride, padding)
    # bf16 output: numerically identical to f32 output (the consumer casts to
    # bf16 before its MXU matmul anyway) but halves HBM writeback + reload.
    y = fused_matmul(patches, w, b, relu=True, out_dtype=jnp.bfloat16)
    n = x.shape[0]
    return y.reshape(n, OH, OW, w.shape[1])             # stays NHWC; no transpose


# ----------------------------------------------------------------------------
# BasicCNN forward (Pallas)
# ----------------------------------------------------------------------------
def basic_cnn_forward(prepped, x_nchw, conv3=False):
    # Single layout change at entry (PyTorch feeds NCHW); NHWC bf16 thereafter.
    # Casting raw pixels to bf16 here is the same rounding the kernel applied
    # before the MXU anyway, but halves the patch-matrix HBM traffic.
    x = x_nchw.transpose(0, 2, 3, 1).astype(jnp.bfloat16)
    y = conv_relu_nhwc(x, prepped["w1"], prepped["b1"], kh=8, kw=8, stride=4)
    y = conv_relu_nhwc(y, prepped["w2"], prepped["b2"], kh=4, kw=4, stride=2)
    if conv3:
        y = conv_relu_nhwc(y, prepped["w3"], prepped["b3"], kh=3, kw=3,
                           stride=1, padding=1)
    n = y.shape[0]
    flat = y.reshape(n, -1)        # HWC flatten; fc1 columns were permuted to match
    return mlp_head(flat, prepped["fc1_w"], prepped["fc1_b"],
                    prepped["fc2_w"], prepped["fc2_b"])


# ----------------------------------------------------------------------------
# One-off parameter prep (outside jit): reorder / transpose / scale / cast.
# ----------------------------------------------------------------------------
def prepare_params(params, h, w, conv3=False):
    def conv_w(wt, scale=1.0):
        o, c, kh, kw = wt.shape
        wt = wt.transpose(2, 3, 1, 0).reshape(kh * kw * c, o)   # (kh,kw,C) -> O
        return (wt * scale).astype(jnp.bfloat16)

    h1, w1 = (h - 8) // 4 + 1, (w - 8) // 4 + 1
    h2, w2 = (h1 - 4) // 2 + 1, (w1 - 4) // 2 + 1

    prepped = {
        # /255 input normalisation folded into conv1's weights (bias unchanged).
        "w1": conv_w(params["w1"], 1.0 / 255.0),
        "b1": params["b1"].reshape(1, -1).astype(jnp.float32),
        "w2": conv_w(params["w2"]),
        "b2": params["b2"].reshape(1, -1).astype(jnp.float32),
    }
    if conv3:
        prepped["w3"] = conv_w(params["w3"])
        prepped["b3"] = params["b3"].reshape(1, -1).astype(jnp.float32)

    # fc1 columns: permute from PyTorch's CHW flatten order to our HWC order.
    fc1 = params["fc1_w"]                               # (256, 32*h2*w2), CHW order
    n_hidden = fc1.shape[0]
    fc1 = fc1.reshape(n_hidden, 32, h2, w2).transpose(0, 2, 3, 1)
    fc1 = fc1.reshape(n_hidden, -1)
    prepped["fc1_w"] = fc1.T.astype(jnp.bfloat16)       # (flat, 256)
    prepped["fc1_b"] = params["fc1_b"].reshape(1, -1).astype(jnp.float32)
    prepped["fc2_w"] = params["fc2_w"].T.astype(jnp.bfloat16)   # (256, out_dim)
    prepped["fc2_b"] = params["fc2_b"].reshape(1, -1).astype(jnp.float32)
    return prepped


# ----------------------------------------------------------------------------
# Pure-JAX reference (f32, NCHW, mirrors the PyTorch module exactly)
# ----------------------------------------------------------------------------
def basic_cnn_ref(params, x, conv3=False):
    dn = ("NCHW", "OIHW", "NCHW")
    y = x / 255.0
    y = lax.conv_general_dilated(y, params["w1"], (4, 4), "VALID",
                                 dimension_numbers=dn)
    y = jnp.maximum(y + params["b1"][None, :, None, None], 0.0)
    y = lax.conv_general_dilated(y, params["w2"], (2, 2), "VALID",
                                 dimension_numbers=dn)
    y = jnp.maximum(y + params["b2"][None, :, None, None], 0.0)
    if conv3:
        y = lax.conv_general_dilated(y, params["w3"], (1, 1),
                                     ((1, 1), (1, 1)), dimension_numbers=dn)
        y = jnp.maximum(y + params["b3"][None, :, None, None], 0.0)
    y = y.reshape(y.shape[0], -1)
    y = jnp.maximum(y @ params["fc1_w"].T + params["fc1_b"], 0.0)
    return y @ params["fc2_w"].T + params["fc2_b"]


# ----------------------------------------------------------------------------
# Deterministic parameter init (kaiming-normal-like, fan_in / relu)
# ----------------------------------------------------------------------------
def init_params(key, input_channels, h, w, output_dim, conv3=False):
    flat = int(32 * ((h // 4 - 1) // 2 - 1) * ((w // 4 - 1) // 2 - 1))
    ks = jax.random.split(key, 12)

    def kaiming(k, shape, fan_in):
        return jax.random.normal(k, shape, jnp.float32) * jnp.sqrt(2.0 / fan_in)

    params = {
        "w1": kaiming(ks[0], (16, input_channels, 8, 8), input_channels * 64),
        "b1": 0.1 * jax.random.normal(ks[1], (16,), jnp.float32),
        "w2": kaiming(ks[2], (32, 16, 4, 4), 16 * 16),
        "b2": 0.1 * jax.random.normal(ks[3], (32,), jnp.float32),
        "fc1_w": kaiming(ks[4], (256, flat), flat),
        "fc1_b": 0.1 * jax.random.normal(ks[5], (256,), jnp.float32),
        "fc2_w": kaiming(ks[6], (output_dim, 256), 256),
        "fc2_b": 0.1 * jax.random.normal(ks[7], (output_dim,), jnp.float32),
    }
    if conv3:
        params["w3"] = kaiming(ks[8], (32, 32, 3, 3), 32 * 9)
        params["b3"] = 0.1 * jax.random.normal(ks[9], (32,), jnp.float32)
    return params


if __name__ == "__main__":
    # Smallest spatial size this architecture supports cleanly is 32:
    # H = W = 32 -> conv1: 7x7, conv2: 2x2, flat = 32*2*2 = 128.
    N, C, H, W = 2, 4, 32, 32
    OUTPUT_DIM = 6

    key = jax.random.PRNGKey(0)
    k_params, k_x = jax.random.split(key)
    raw = init_params(k_params, C, H, W, OUTPUT_DIM, conv3=False)
    prepped = prepare_params(raw, H, W, conv3=False)       # one-off, outside jit
    x = jax.random.uniform(k_x, (N, C, H, W), jnp.float32, 0.0, 255.0)

    fwd = jax.jit(functools.partial(basic_cnn_forward, conv3=False))
    out = jax.block_until_ready(fwd(prepped, x))

    ref = basic_cnn_ref(raw, x, conv3=False)
    assert out.shape == (N, OUTPUT_DIM), out.shape
    # bf16 MXU inputs / bf16 inter-layer activations -> ~1e-2 tolerance.
    assert jnp.allclose(out, ref, rtol=2e-2, atol=2e-2), (
        "mismatch", float(jnp.max(jnp.abs(out - ref))))

    print("KERNEL_OK")
</pallas_src>

<mosaic_0001>
module attributes {stable_mosaic.version = 11 : i64} {
  func.func @_matmul_bias_kernel(%arg0: i32, %arg1: memref<112x256xbf16, #tpu.memory_space<vmem>>, %arg2: memref<256x16xbf16, #tpu.memory_space<vmem>>, %arg3: memref<1x16xf32, #tpu.memory_space<vmem>>, %arg4: memref<112x16xbf16, #tpu.memory_space<vmem>>) attributes {dimension_semantics = [#tpu.dimension_semantics<parallel>], iteration_bounds = array<i64: 1>, scalar_prefetch = 0 : i64, scratch_operands = 0 : i64, tpu.core_type = #tpu.core_type<tc>, window_params = [{transform_indices = @transform_0, window_bounds = array<i64: 112, 256>}, {pipeline_mode = #tpu.pipeline_mode<synchronous>, transform_indices = @transform_1, window_bounds = array<i64: 256, 16>}, {pipeline_mode = #tpu.pipeline_mode<synchronous>, transform_indices = @transform_2, window_bounds = array<i64: 1, 16>}, {transform_indices = @transform_3, window_bounds = array<i64: 112, 16>}]} {
    %c0 = arith.constant 0 : index
    %c0_0 = arith.constant 0 : index
    %0 = vector.load %arg1[%c0, %c0_0] : memref<112x256xbf16, #tpu.memory_space<vmem>>, vector<112x256xbf16>
    %c0_1 = arith.constant 0 : index
    %c0_2 = arith.constant 0 : index
    %1 = vector.load %arg2[%c0_1, %c0_2] : memref<256x16xbf16, #tpu.memory_space<vmem>>, vector<256x16xbf16>
    %cst = arith.constant dense<0.000000e+00> : vector<112x16xf32>
    %2 = tpu.matmul %0, %1, %cst {dimension_numbers = #tpu.dot_dimension_numbers<[1], [0], [0], [1], [0, 0, 1, 1], [], []>} : vector<112x256xbf16>, vector<256x16xbf16>, vector<112x16xf32> -> vector<112x16xf32>
    %c0_3 = arith.constant 0 : index
    %c0_4 = arith.constant 0 : index
    %3 = vector.load %arg3[%c0_3, %c0_4] : memref<1x16xf32, #tpu.memory_space<vmem>>, vector<1x16xf32>
    %4 = vector.broadcast %3 : vector<1x16xf32> to vector<112x16xf32>
    %5 = arith.addf %2, %4 : vector<112x16xf32>
    %cst_5 = arith.constant 0.000000e+00 : f32
    %6 = vector.broadcast %cst_5 : f32 to vector<112x16xf32>
    %7 = arith.maximumf %5, %6 : vector<112x16xf32>
    %8 = arith.truncf %7 : vector<112x16xf32> to vector<112x16xbf16>
    %c0_6 = arith.constant 0 : index
    %c0_7 = arith.constant 0 : index
    %9 = vector.load %arg4[%c0_6, %c0_7] : memref<112x16xbf16, #tpu.memory_space<vmem>>, vector<112x16xbf16>
    tpu.vector_store %arg4[%c0_6, %c0_7], %8 {strides = array<i32>} : memref<112x16xbf16, #tpu.memory_space<vmem>>, vector<112x16xbf16>,
    return
  }
  func.func @transform_0(%arg0: i32) -> (i32, i32) {
    %c0_i32 = arith.constant 0 : i32
    %c0_i32_0 = arith.constant 0 : i32
    return %arg0, %c0_i32 : i32, i32
  }
  func.func @transform_1(%arg0: i32) -> (i32, i32) {
    %c0_i32 = arith.constant 0 : i32
    %c0_i32_0 = arith.constant 0 : i32
    %c0_i32_1 = arith.constant 0 : i32
    return %c0_i32, %c0_i32_0 : i32, i32
  }
  func.func @transform_2(%arg0: i32) -> (i32, i32) {
    %c0_i32 = arith.constant 0 : i32
    %c0_i32_0 = arith.constant 0 : i32
    %c0_i32_1 = arith.constant 0 : i32
    return %c0_i32, %c0_i32_0 : i32, i32
  }
  func.func @transform_3(%arg0: i32) -> (i32, i32) {
    %c0_i32 = arith.constant 0 : i32
    %c0_i32_0 = arith.constant 0 : i32
    return %arg0, %c0_i32 : i32, i32
  }
}

module attributes {stable_mosaic.version = 11 : i64} {
  func.func @_matmul_bias_kernel(%arg0: i32, %arg1: memref<16x256xbf16, #tpu.memory_space<vmem>>, %arg2: memref<256x32xbf16, #tpu.memory_space<vmem>>, %arg3: memref<1x32xf32, #tpu.memory_space<vmem>>, %arg4: memref<16x32xbf16, #tpu.memory_space<vmem>>) attributes {dimension_semantics = [#tpu.dimension_semantics<parallel>], iteration_bounds = array<i64: 1>, scalar_prefetch = 0 : i64, scratch_operands = 0 : i64, tpu.core_type = #tpu.core_type<tc>, window_params = [{transform_indices = @transform_0, window_bounds = array<i64: 16, 256>}, {pipeline_mode = #tpu.pipeline_mode<synchronous>, transform_indices = @transform_1, window_bounds = array<i64: 256, 32>}, {pipeline_mode = #tpu.pipeline_mode<synchronous>, transform_indices = @transform_2, window_bounds = array<i64: 1, 32>}, {transform_indices = @transform_3, window_bounds = array<i64: 16, 32>}]} {
    %c0 = arith.constant 0 : index
    %c0_0 = arith.constant 0 : index
    %0 = vector.load %arg1[%c0, %c0_0] : memref<16x256xbf16, #tpu.memory_space<vmem>>, vector<16x256xbf16>
    %c0_1 = arith.constant 0 : index
    %c0_2 = arith.constant 0 : index
    %1 = vector.load %arg2[%c0_1, %c0_2] : memref<256x32xbf16, #tpu.memory_space<vmem>>, vector<256x32xbf16>
    %cst = arith.constant dense<0.000000e+00> : vector<16x32xf32>
    %2 = tpu.matmul %0, %1, %cst {dimension_numbers = #tpu.dot_dimension_numbers<[1], [0], [0], [1], [0, 0, 1, 1], [], []>} : vector<16x256xbf16>, vector<256x32xbf16>, vector<16x32xf32> -> vector<16x32xf32>
    %c0_3 = arith.constant 0 : index
    %c0_4 = arith.constant 0 : index
    %3 = vector.load %arg3[%c0_3, %c0_4] : memref<1x32xf32, #tpu.memory_space<vmem>>, vector<1x32xf32>
    %4 = vector.broadcast %3 : vector<1x32xf32> to vector<16x32xf32>
    %5 = arith.addf %2, %4 : vector<16x32xf32>
    %cst_5 = arith.constant 0.000000e+00 : f32
    %6 = vector.broadcast %cst_5 : f32 to vector<16x32xf32>
    %7 = arith.maximumf %5, %6 : vector<16x32xf32>
    %8 = arith.truncf %7 : vector<16x32xf32> to vector<16x32xbf16>
    %c0_6 = arith.constant 0 : index
    %c0_7 = arith.constant 0 : index
    %9 = vector.load %arg4[%c0_6, %c0_7] : memref<16x32xbf16, #tpu.memory_space<vmem>>, vector<16x32xbf16>
    tpu.vector_store %arg4[%c0_6, %c0_7], %8 {strides = array<i32>} : memref<16x32xbf16, #tpu.memory_space<vmem>>, vector<16x32xbf16>,
    return
  }
  func.func @transform_0(%arg0: i32) -> (i32, i32) {
    %c0_i32 = arith.constant 0 : i32
    %c0_i32_0 = arith.constant 0 : i32
    return %arg0, %c0_i32 : i32, i32
  }
  func.func @transform_1(%arg0: i32) -> (i32, i32) {
    %c0_i32 = arith.constant 0 : i32
    %c0_i32_0 = arith.constant 0 : i32
    %c0_i32_1 = arith.constant 0 : i32
    return %c0_i32, %c0_i32_0 : i32, i32
  }
  func.func @transform_2(%arg0: i32) -> (i32, i32) {
    %c0_i32 = arith.constant 0 : i32
    %c0_i32_0 = arith.constant 0 : i32
    %c0_i32_1 = arith.constant 0 : i32
    return %c0_i32, %c0_i32_0 : i32, i32
  }
  func.func @transform_3(%arg0: i32) -> (i32, i32) {
    %c0_i32 = arith.constant 0 : i32
    %c0_i32_0 = arith.constant 0 : i32
    return %arg0, %c0_i32 : i32, i32
  }
}

module attributes {stable_mosaic.version = 11 : i64} {
  func.func @_mlp_head_kernel(%arg0: i32, %arg1: memref<16x128xbf16, #tpu.memory_space<vmem>>, %arg2: memref<128x256xbf16, #tpu.memory_space<vmem>>, %arg3: memref<1x256xf32, #tpu.memory_space<vmem>>, %arg4: memref<256x6xbf16, #tpu.memory_space<vmem>>, %arg5: memref<1x6xf32, #tpu.memory_space<vmem>>, %arg6: memref<16x6xf32, #tpu.memory_space<vmem>>) attributes {dimension_semantics = [#tpu.dimension_semantics<parallel>], iteration_bounds = array<i64: 1>, scalar_prefetch = 0 : i64, scratch_operands = 0 : i64, tpu.core_type = #tpu.core_type<tc>, window_params = [{transform_indices = @transform_0, window_bounds = array<i64: 16, 128>}, {pipeline_mode = #tpu.pipeline_mode<synchronous>, transform_indices = @transform_1, window_bounds = array<i64: 128, 256>}, {pipeline_mode = #tpu.pipeline_mode<synchronous>, transform_indices = @transform_2, window_bounds = array<i64: 1, 256>}, {pipeline_mode = #tpu.pipeline_mode<synchronous>, transform_indices = @transform_3, window_bounds = array<i64: 256, 6>}, {pipeline_mode = #tpu.pipeline_mode<synchronous>, transform_indices = @transform_4, window_bounds = array<i64: 1, 6>}, {transform_indices = @transform_5, window_bounds = array<i64: 16, 6>}]} {
    %c0 = arith.constant 0 : index
    %c0_0 = arith.constant 0 : index
    %0 = vector.load %arg1[%c0, %c0_0] : memref<16x128xbf16, #tpu.memory_space<vmem>>, vector<16x128xbf16>
    %c0_1 = arith.constant 0 : index
    %c0_2 = arith.constant 0 : index
    %1 = vector.load %arg2[%c0_1, %c0_2] : memref<128x256xbf16, #tpu.memory_space<vmem>>, vector<128x256xbf16>
    %cst = arith.constant dense<0.000000e+00> : vector<16x256xf32>
    %2 = tpu.matmul %0, %1, %cst {dimension_numbers = #tpu.dot_dimension_numbers<[1], [0], [0], [1], [0, 0, 1, 1], [], []>} : vector<16x128xbf16>, vector<128x256xbf16>, vector<16x256xf32> -> vector<16x256xf32>
    %c0_3 = arith.constant 0 : index
    %c0_4 = arith.constant 0 : index
    %3 = vector.load %arg3[%c0_3, %c0_4] : memref<1x256xf32, #tpu.memory_space<vmem>>, vector<1x256xf32>
    %4 = vector.broadcast %3 : vector<1x256xf32> to vector<16x256xf32>
    %5 = arith.addf %2, %4 : vector<16x256xf32>
    %cst_5 = arith.constant 0.000000e+00 : f32
    %6 = vector.broadcast %cst_5 : f32 to vector<16x256xf32>
    %7 = arith.maximumf %5, %6 : vector<16x256xf32>
    %8 = arith.truncf %7 : vector<16x256xf32> to vector<16x256xbf16>
    %c0_6 = arith.constant 0 : index
    %c0_7 = arith.constant 0 : index
    %9 = vector.load %arg4[%c0_6, %c0_7] : memref<256x6xbf16, #tpu.memory_space<vmem>>, vector<256x6xbf16>
    %cst_8 = arith.constant dense<0.000000e+00> : vector<16x6xf32>
    %10 = tpu.matmul %8, %9, %cst_8 {dimension_numbers = #tpu.dot_dimension_numbers<[1], [0], [0], [1], [0, 0, 1, 1], [], []>} : vector<16x256xbf16>, vector<256x6xbf16>, vector<16x6xf32> -> vector<16x6xf32>
    %c0_9 = arith.constant 0 : index
    %c0_10 = arith.constant 0 : index
    %11 = vector.load %arg5[%c0_9, %c0_10] : memref<1x6xf32, #tpu.memory_space<vmem>>, vector<1x6xf32>
    %12 = vector.broadcast %11 : vector<1x6xf32> to vector<16x6xf32>
    %13 = arith.addf %10, %12 : vector<16x6xf32>
    %c0_11 = arith.constant 0 : index
    %c0_12 = arith.constant 0 : index
    %14 = vector.load %arg6[%c0_11, %c0_12] : memref<16x6xf32, #tpu.memory_space<vmem>>, vector<16x6xf32>
    tpu.vector_store %arg6[%c0_11, %c0_12], %13 {strides = array<i32>} : memref<16x6xf32, #tpu.memory_space<vmem>>, vector<16x6xf32>,
    return
  }
  func.func @transform_0(%arg0: i32) -> (i32, i32) {
    %c0_i32 = arith.constant 0 : i32
    %c0_i32_0 = arith.constant 0 : i32
    return %arg0, %c0_i32 : i32, i32
  }
  func.func @transform_1(%arg0: i32) -> (i32, i32) {
    %c0_i32 = arith.constant 0 : i32
    %c0_i32_0 = arith.constant 0 : i32
    %c0_i32_1 = arith.constant 0 : i32
    return %c0_i32, %c0_i32_0 : i32, i32
  }
  func.func @transform_2(%arg0: i32) -> (i32, i32) {
    %c0_i32 = arith.constant 0 : i32
    %c0_i32_0 = arith.constant 0 : i32
    %c0_i32_1 = arith.constant 0 : i32
    return %c0_i32, %c0_i32_0 : i32, i32
  }
  func.func @transform_3(%arg0: i32) -> (i32, i32) {
    %c0_i32 = arith.constant 0 : i32
    %c0_i32_0 = arith.constant 0 : i32
    %c0_i32_1 = arith.constant 0 : i32
    return %c0_i32, %c0_i32_0 : i32, i32
  }
  func.func @transform_4(%arg0: i32) -> (i32, i32) {
    %c0_i32 = arith.constant 0 : i32
    %c0_i32_0 = arith.constant 0 : i32
    %c0_i32_1 = arith.constant 0 : i32
    return %c0_i32, %c0_i32_0 : i32, i32
  }
  func.func @transform_5(%arg0: i32) -> (i32, i32) {
    %c0_i32 = arith.constant 0 : i32
    %c0_i32_0 = arith.constant 0 : i32
    return %arg0, %c0_i32 : i32, i32
  }
}

</mosaic_0001>

<llo_original>
// kernel: basic_cnn_forward.3
$region0: #{basic_cnn_forward.3}
  #allocation0 [shape = 'u32[]', space=smem, size = 0x4, offset = 0x4, fixed_abs, tag = 'smem constant byte address 0x4 - core index']
  #allocation1 [shape = 'u32[144,128]{1,0:T(1,128)}', space=vmem, size = 0x12000, scoped, tag = 'internal scratch']
  %s0 = inlined_call_operand.vmem [shape: bf16[112,256], index: 0, kind: input, shape index: {}]
  %s1 = inlined_call_operand.vmem [shape: bf16[256,16], index: 1, kind: input, shape index: {}]
  %s2 = inlined_call_operand.vmem [shape: f32[1,16], index: 2, kind: input, shape index: {}]
  %s3 = inlined_call_operand.vmem [shape: bf16[112,16], index: 3, kind: output, shape index: {}]
  %s4 = sld [smem:[#allocation0]]
  $region22: #{basic_cnn_forward.3} parent=0
    _
  %s6 = ssub.s32 1, %s4
  %s7 = scalar_select 0, %s6, %s4
  // Predicated region
  $region2: #{basic_cnn_forward.3} parent=0 // pred_check
    _
  $region3: #{basic_cnn_forward.3} parent=0 // pred_check_branch
    %9 = sbr.rel (0) target = $region5
  $region4: #{basic_cnn_forward.3} parent=0 // pred_region
    _
  $region5: #{basic_cnn_forward.3} parent=0 // pred_fallthru
    _
  // Predicated region
  $region6: #{basic_cnn_forward.3} parent=0 // pred_check
    _
  $region7: #{basic_cnn_forward.3} parent=0 // pred_check_branch
    %11 = sbr.rel (0) target = $region9
  $region8: #{basic_cnn_forward.3} parent=0 // pred_region
    _
  $region9: #{basic_cnn_forward.3} parent=0 // pred_fallthru
    _
  // Predicated region
  $region10: #{basic_cnn_forward.3} parent=0 // pred_check
    _
  $region11: #{basic_cnn_forward.3} parent=0 // pred_check_branch
    %13 = sbr.rel (0) target = $region13
  $region12: #{basic_cnn_forward.3} parent=0 // pred_region
    _
  $region13: #{basic_cnn_forward.3} parent=0 // pred_fallthru
    _
  %v15 = vld [vmem:[%s0] sm:$0xff]
  %v16 = vld [vmem:[%s0 + $0x8] sm:$0xff]
  %v17 = vld [vmem:[%s0 + $0x10] sm:$0xff]
  %v18 = vld [vmem:[%s0 + $0x18] sm:$0xff]
  %v19 = vld [vmem:[%s0 + $0x20] sm:$0xff]
  %v20 = vld [vmem:[%s0 + $0x28] sm:$0xff]
  %v21 = vld [vmem:[%s0 + $0x30] sm:$0xff]
  %v22 = vld [vmem:[%s0 + $0x38] sm:$0xff]
  %v23 = vld [vmem:[%s0 + $0x40] sm:$0xff]
  %v24 = vld [vmem:[%s0 + $0x48] sm:$0xff]
  %v25 = vld [vmem:[%s0 + $0x50] sm:$0xff]
  %v26 = vld [vmem:[%s0 + $0x58] sm:$0xff]
  %v27 = vld [vmem:[%s0 + $0x60] sm:$0xff]
  %v28 = vld [vmem:[%s0 + $0x68] sm:$0xff]
  %v29 = vld [vmem:[%s1] sm:$0xf]
  %v30 = vld [vmem:[%s1 + $0x4] sm:$0xf]
  %v31 = vld [vmem:[%s1 + $0x8] sm:$0xf]
  %v32 = vld [vmem:[%s1 + $0xc] sm:$0xf]
  %v33 = vld [vmem:[%s1 + $0x10] sm:$0xf]
  %v34 = vld [vmem:[%s1 + $0x14] sm:$0xf]
  %v35 = vld [vmem:[%s1 + $0x18] sm:$0xf]
  %v36 = vld [vmem:[%s1 + $0x1c] sm:$0xf]
  %v37 = vld [vmem:[%s1 + $0x20] sm:$0xf]
  %v38 = vld [vmem:[%s1 + $0x24] sm:$0xf]
  %v39 = vld [vmem:[%s1 + $0x28] sm:$0xf]
  %v40 = vld [vmem:[%s1 + $0x2c] sm:$0xf]
  %v41 = vld [vmem:[%s1 + $0x30] sm:$0xf]
  %v42 = vld [vmem:[%s1 + $0x34] sm:$0xf]
  %v43 = vld [vmem:[%s1 + $0x38] sm:$0xf]
  %v44 = vld [vmem:[%s1 + $0x3c] sm:$0xf]
  %v45 = vld [vmem:[%s1 + $0x40] sm:$0xf]
  %v46 = vld [vmem:[%s1 + $0x44] sm:$0xf]
  %v47 = vld [vmem:[%s1 + $0x48] sm:$0xf]
  %v48 = vld [vmem:[%s1 + $0x4c] sm:$0xf]
  %v49 = vld [vmem:[%s1 + $0x50] sm:$0xf]
  %v50 = vld [vmem:[%s1 + $0x54] sm:$0xf]
  %v51 = vld [vmem:[%s1 + $0x58] sm:$0xf]
  %v52 = vld [vmem:[%s1 + $0x5c] sm:$0xf]
  %v53 = vld [vmem:[%s1 + $0x60] sm:$0xf]
  %v54 = vld [vmem:[%s1 + $0x64] sm:$0xf]
  %v55 = vld [vmem:[%s1 + $0x68] sm:$0xf]
  %v56 = vld [vmem:[%s1 + $0x6c] sm:$0xf]
  %v57 = vld [vmem:[%s1 + $0x70] sm:$0xf]
  %v58 = vld [vmem:[%s1 + $0x74] sm:$0xf]
  %v59 = vld [vmem:[%s1 + $0x78] sm:$0xf]
  %v60 = vld [vmem:[%s1 + $0x7c] sm:$0xf]
  %v61 = vld [vmem:[%s2] sm:$0x1]
  %v63 = vlaneseq
  %v64 = vshrl.u32 %v63, 7
  %v65 = vsub.s32 0, %v64
  %v66 = vrot.slane %v61, %v65
  %v82 = vunpack.c.l.b16 %v15
  %v83 = vunpack.c.h.b16 %v15
  %v84 = vunpack.c.l.b16 %v16
  %v85 = vunpack.c.h.b16 %v16
  %v86 = vunpack.c.l.b16 %v17
  %v87 = vunpack.c.h.b16 %v17
  %v88 = vunpack.c.l.b16 %v18
  %v89 = vunpack.c.h.b16 %v18
  %v90 = vunpack.c.l.b16 %v19
  %v91 = vunpack.c.h.b16 %v19
  %v92 = vunpack.c.l.b16 %v20
  %v93 = vunpack.c.h.b16 %v20
  %v94 = vunpack.c.l.b16 %v21
  %v95 = vunpack.c.h.b16 %v21
  %v96 = vunpack.c.l.b16 %v22
  %v97 = vunpack.c.h.b16 %v22
  %v98 = vunpack.c.l.b16 %v23
  %v99 = vunpack.c.h.b16 %v23
  %v100 = vunpack.c.l.b16 %v24
  %v101 = vunpack.c.h.b16 %v24
  %v102 = vunpack.c.l.b16 %v25
  %v103 = vunpack.c.h.b16 %v25
  %v104 = vunpack.c.l.b16 %v26
  %v105 = vunpack.c.h.b16 %v26
  %v106 = vunpack.c.l.b16 %v27
  %v107 = vunpack.c.h.b16 %v27
  %v108 = vunpack.c.l.b16 %v28
  %v109 = vunpack.c.h.b16 %v28
  %v110 = vpack.c.b16 %v84, %v82
  %v111 = vpack.c.b16 %v85, %v83
  %v112 = vpack.c.b16 %v88, %v86
  %v113 = vpack.c.b16 %v89, %v87
  %v114 = vpack.c.b16 %v92, %v90
  %v115 = vpack.c.b16 %v93, %v91
  %v116 = vpack.c.b16 %v96, %v94
  %v117 = vpack.c.b16 %v97, %v95
  %v118 = vpack.c.b16 %v100, %v98
  %v119 = vpack.c.b16 %v101, %v99
  %v120 = vpack.c.b16 %v104, %v102
  %v121 = vpack.c.b16 %v105, %v103
  %v122 = vpack.c.b16 %v108, %v106
  %v123 = vpack.c.b16 %v109, %v107
  %v170 = vunpack.c.l.b16 %v29
  %v171 = vunpack.c.l.b16 %v30
  %v172 = vunpack.c.l.b16 %v31
  %v173 = vunpack.c.l.b16 %v32
  %v174 = vunpack.c.l.b16 %v33
  %v175 = vunpack.c.l.b16 %v34
  %v176 = vunpack.c.l.b16 %v35
  %v177 = vunpack.c.l.b16 %v36
  %v178 = vunpack.c.l.b16 %v37
  %v179 = vunpack.c.l.b16 %v38
  %v180 = vunpack.c.l.b16 %v39
  %v181 = vunpack.c.l.b16 %v40
  %v182 = vunpack.c.l.b16 %v41
  %v183 = vunpack.c.l.b16 %v42
  %v184 = vunpack.c.l.b16 %v43
  %v185 = vunpack.c.l.b16 %v44
  %v186 = vunpack.c.l.b16 %v45
  %v187 = vunpack.c.l.b16 %v46
  %v188 = vunpack.c.l.b16 %v47
  %v189 = vunpack.c.l.b16 %v48
  %v190 = vunpack.c.l.b16 %v49
  %v191 = vunpack.c.l.b16 %v50
  %v192 = vunpack.c.l.b16 %v51
  %v193 = vunpack.c.l.b16 %v52
  %v194 = vunpack.c.l.b16 %v53
  %v195 = vunpack.c.l.b16 %v54
  %v196 = vunpack.c.l.b16 %v55
  %v197 = vunpack.c.l.b16 %v56
  %v198 = vunpack.c.l.b16 %v57
  %v199 = vunpack.c.l.b16 %v58
  %v200 = vunpack.c.l.b16 %v59
  %v201 = vunpack.c.l.b16 %v60
  %v202 = vpack.c.b16 %v171, %v170
  %v203 = vpack.c.b16 %v173, %v172
  %v204 = vpack.c.b16 %v175, %v174
  %v205 = vpack.c.b16 %v177, %v176
  %v206 = vpack.c.b16 %v179, %v178
  %v207 = vpack.c.b16 %v181, %v180
  %v208 = vpack.c.b16 %v183, %v182
  %v209 = vpack.c.b16 %v185, %v184
  %v210 = vpack.c.b16 %v187, %v186
  %v211 = vpack.c.b16 %v189, %v188
  %v212 = vpack.c.b16 %v191, %v190
  %v213 = vpack.c.b16 %v193, %v192
  %v214 = vpack.c.b16 %v195, %v194
  %v215 = vpack.c.b16 %v197, %v196
  %v216 = vpack.c.b16 %v199, %v198
  %v217 = vpack.c.b16 %v201, %v200
  %234 = vmatprep.subr.bf16.mxu0 0
  %235 = vmatpush1.bf16.msra.mxu0 %v202
  %236 = vmatprep.subr.bf16.mxu0 0
  %237 = vmatpush1.bf16.msra.mxu0 %v203
  %238 = vmatprep.subr.bf16.mxu0 0
  %239 = vmatpush1.bf16.msra.mxu0 %v204
  %240 = vmatprep.subr.bf16.mxu0 0
  %241 = vmatpush1.bf16.msra.mxu0 %v205
  %242 = vmatprep.subr.bf16.mxu0 0
  %243 = vmatpush1.bf16.msra.mxu0 %v206
  %244 = vmatprep.subr.bf16.mxu0 0
  %245 = vmatpush1.bf16.msra.mxu0 %v207
  %246 = vmatprep.subr.bf16.mxu0 0
  %247 = vmatpush1.bf16.msra.mxu0 %v208
  %248 = vmatprep.subr.bf16.mxu0 0
  %249 = vmatpush1.bf16.msra.mxu0 %v209
  %250 = vmatprep.subr.bf16.mxu0 0
  %251 = vmatpush1.bf16.msra.mxu0 %v210
  %252 = vmatprep.subr.bf16.mxu0 0
  %253 = vmatpush1.bf16.msra.mxu0 %v211
  %254 = vmatprep.subr.bf16.mxu0 0
  %255 = vmatpush1.bf16.msra.mxu0 %v212
  %256 = vmatprep.subr.bf16.mxu0 0
  %257 = vmatpush1.bf16.msra.mxu0 %v213
  %258 = vmatprep.subr.bf16.mxu0 0
  %259 = vmatpush1.bf16.msra.mxu0 %v214
  %260 = vmatprep.subr.bf16.mxu0 0
  %261 = vmatpush1.bf16.msra.mxu0 %v215
  %262 = vmatprep.subr.bf16.mxu0 0
  %263 = vmatpush1.bf16.msra.mxu0 %v216
  %264 = vmatprep.subr.bf16.mxu0 0
  %265 = vmatpush1.bf16.msra.mxu0 %v217
  %266 = vmatprep.mubr.bf16.mxu0 %v111
  %267 = vmatmul.mubr.bf16.gmra.mrb[0].mxu0 %v110
  %v268 = vpop.f32.mrb[0].mxu0
  %v269 = vadd.f32 %v66, %v268
  %v270 = vpop.f32.mrb[0].mxu0
  %v271 = vpop.f32.mrb[0].mxu0
  %v272 = vadd.f32 %v66, %v271
  %v273 = vpop.f32.mrb[0].mxu0
  %274 = vmatprep.mubr.bf16.mxu0 %v113
  %275 = vmatmul.mubr.bf16.gmra.mrb[0].mxu0 %v112
  %v276 = vpop.f32.mrb[0].mxu0
  %v277 = vadd.f32 %v66, %v276
  %v278 = vpop.f32.mrb[0].mxu0
  %v279 = vpop.f32.mrb[0].mxu0
  %v280 = vadd.f32 %v66, %v279
  %v281 = vpop.f32.mrb[0].mxu0
  %282 = vmatprep.mubr.bf16.mxu0 %v115
  %283 = vmatmul.mubr.bf16.gmra.mrb[0].mxu0 %v114
  %v284 = vpop.f32.mrb[0].mxu0
  %v285 = vadd.f32 %v66, %v284
  %v286 = vpop.f32.mrb[0].mxu0
  %v287 = vpop.f32.mrb[0].mxu0
  %v288 = vadd.f32 %v66, %v287
  %v289 = vpop.f32.mrb[0].mxu0
  %290 = vmatprep.mubr.bf16.mxu0 %v117
  %291 = vmatmul.mubr.bf16.gmra.mrb[0].mxu0 %v116
  %v292 = vpop.f32.mrb[0].mxu0
  %v293 = vadd.f32 %v66, %v292
  %v294 = vpop.f32.mrb[0].mxu0
  %v295 = vpop.f32.mrb[0].mxu0
  %v296 = vadd.f32 %v66, %v295
  %v297 = vpop.f32.mrb[0].mxu0
  %298 = vmatprep.mubr.bf16.mxu0 %v119
  %299 = vmatmul.mubr.bf16.gmra.mrb[0].mxu0 %v118
  %v300 = vpop.f32.mrb[0].mxu0
  %v301 = vadd.f32 %v66, %v300
  %v302 = vpop.f32.mrb[0].mxu0
  %v303 = vpop.f32.mrb[0].mxu0
  %v304 = vadd.f32 %v66, %v303
  %v305 = vpop.f32.mrb[0].mxu0
  %306 = vmatprep.mubr.bf16.mxu0 %v121
  %307 = vmatmul.mubr.bf16.gmra.mrb[0].mxu0 %v120
  %v308 = vpop.f32.mrb[0].mxu0
  %v309 = vadd.f32 %v66, %v308
  %v310 = vpop.f32.mrb[0].mxu0
  %v311 = vpop.f32.mrb[0].mxu0
  %v312 = vadd.f32 %v66, %v311
  %v313 = vpop.f32.mrb[0].mxu0
  %314 = vmatprep.mubr.bf16.mxu0 %v123
  %315 = vmatmul.mubr.bf16.gmra.mrb[0].mxu0 %v122
  %v316 = vpop.f32.mrb[0].mxu0
  %v317 = vadd.f32 %v66, %v316
  %v318 = vpop.f32.mrb[0].mxu0
  %v319 = vpop.f32.mrb[0].mxu0
  %v320 = vadd.f32 %v66, %v319
  %v321 = vpop.f32.mrb[0].mxu0
  %322 = vdwg.mxu0
  %v323 = vmax.f32 %v269, 0.0
  %v324 = vmax.f32 %v272, 0.0
  %v325 = vmax.f32 %v277, 0.0
  %v326 = vmax.f32 %v280, 0.0
  %v327 = vmax.f32 %v285, 0.0
  %v328 = vmax.f32 %v288, 0.0
  %v329 = vmax.f32 %v293, 0.0
  %v330 = vmax.f32 %v296, 0.0
  %v331 = vmax.f32 %v301, 0.0
  %v332 = vmax.f32 %v304, 0.0
  %v333 = vmax.f32 %v309, 0.0
  %v334 = vmax.f32 %v312, 0.0
  %v335 = vmax.f32 %v317, 0.0
  %v336 = vmax.f32 %v320, 0.0
  %v337 = vpack.c.bf16 %v324, %v323
  %v338 = vpack.c.bf16 %v326, %v325
  %v339 = vpack.c.bf16 %v328, %v327
  %v340 = vpack.c.bf16 %v330, %v329
  %v341 = vpack.c.bf16 %v332, %v331
  %v342 = vpack.c.bf16 %v334, %v333
  %v343 = vpack.c.bf16 %v336, %v335
  %v351 = vunpack.c.l.b16 %v337
  %v352 = vunpack.c.h.b16 %v337
  %v353 = vunpack.c.l.b16 %v338
  %v354 = vunpack.c.h.b16 %v338
  %v355 = vunpack.c.l.b16 %v339
  %v356 = vunpack.c.h.b16 %v339
  %v357 = vunpack.c.l.b16 %v340
  %v358 = vunpack.c.h.b16 %v340
  %v359 = vunpack.c.l.b16 %v341
  %v360 = vunpack.c.h.b16 %v341
  %v361 = vunpack.c.l.b16 %v342
  %v362 = vunpack.c.h.b16 %v342
  %v363 = vunpack.c.l.b16 %v343
  %v364 = vunpack.c.h.b16 %v343
  %v365 = vpack.c.b16 %v351, %v351
  %v366 = vpack.c.b16 %v352, %v352
  %v367 = vpack.c.b16 %v353, %v353
  %v368 = vpack.c.b16 %v354, %v354
  %v369 = vpack.c.b16 %v355, %v355
  %v370 = vpack.c.b16 %v356, %v356
  %v371 = vpack.c.b16 %v357, %v357
  %v372 = vpack.c.b16 %v358, %v358
  %v373 = vpack.c.b16 %v359, %v359
  %v374 = vpack.c.b16 %v360, %v360
  %v375 = vpack.c.b16 %v361, %v361
  %v376 = vpack.c.b16 %v362, %v362
  %v377 = vpack.c.b16 %v363, %v363
  %v378 = vpack.c.b16 %v364, %v364
  %vm393 = vcmask 125952
  %394 = vst.msk [vmem:[%s3] sm:$0xf] %vm393, %v365
  %395 = vst.msk [vmem:[%s3 + $0x4] sm:$0xf] %vm393, %v366
  %396 = vst.msk [vmem:[%s3 + $0x8] sm:$0xf] %vm393, %v367
  %397 = vst.msk [vmem:[%s3 + $0xc] sm:$0xf] %vm393, %v368
  %398 = vst.msk [vmem:[%s3 + $0x10] sm:$0xf] %vm393, %v369
  %399 = vst.msk [vmem:[%s3 + $0x14] sm:$0xf] %vm393, %v370
  %400 = vst.msk [vmem:[%s3 + $0x18] sm:$0xf] %vm393, %v371
  %401 = vst.msk [vmem:[%s3 + $0x1c] sm:$0xf] %vm393, %v372
  %402 = vst.msk [vmem:[%s3 + $0x20] sm:$0xf] %vm393, %v373
  %403 = vst.msk [vmem:[%s3 + $0x24] sm:$0xf] %vm393, %v374
  %404 = vst.msk [vmem:[%s3 + $0x28] sm:$0xf] %vm393, %v375
  %405 = vst.msk [vmem:[%s3 + $0x2c] sm:$0xf] %vm393, %v376
  %406 = vst.msk [vmem:[%s3 + $0x30] sm:$0xf] %vm393, %v377
  %407 = vst.msk [vmem:[%s3 + $0x34] sm:$0xf] %vm393, %v378
  // Predicated region
  $region14: #{basic_cnn_forward.3} parent=0 // pred_check
    _
  $region15: #{basic_cnn_forward.3} parent=0 // pred_check_branch
    %409 = sbr.rel (0) target = $region17
  $region16: #{basic_cnn_forward.3} parent=0 // pred_region
    _
  $region17: #{basic_cnn_forward.3} parent=0 // pred_fallthru
    _
  // Predicated region
  $region18: #{basic_cnn_forward.3} parent=0 // pred_check
    _
  $region19: #{basic_cnn_forward.3} parent=0 // pred_check_branch
    %411 = sbr.rel (0) target = $region21
  $region20: #{basic_cnn_forward.3} parent=0 // pred_region
    _
  $region21: #{basic_cnn_forward.3} parent=0 // pred_fallthru
    _

// kernel: basic_cnn_forward.4
$region0: #{basic_cnn_forward.4}
  #allocation0 [shape = 'u32[]', space=smem, size = 0x4, offset = 0x4, fixed_abs, tag = 'smem constant byte address 0x4 - core index']
  #allocation1 [shape = 'u32[144,128]{1,0:T(1,128)}', space=vmem, size = 0x12000, scoped, tag = 'internal scratch']
  %s0 = inlined_call_operand.vmem [shape: bf16[16,256], index: 0, kind: input, shape index: {}]
  %s1 = inlined_call_operand.vmem [shape: bf16[256,32], index: 1, kind: input, shape index: {}]
  %s2 = inlined_call_operand.vmem [shape: f32[1,32], index: 2, kind: input, shape index: {}]
  %s3 = inlined_call_operand.vmem [shape: bf16[16,32], index: 3, kind: output, shape index: {}]
  %s4 = sld [smem:[#allocation0]]
  $region22: #{basic_cnn_forward.4} parent=0
    _
  %s6 = ssub.s32 1, %s4
  %s7 = scalar_select 0, %s6, %s4
  // Predicated region
  $region2: #{basic_cnn_forward.4} parent=0 // pred_check
    _
  $region3: #{basic_cnn_forward.4} parent=0 // pred_check_branch
    %9 = sbr.rel (0) target = $region5
  $region4: #{basic_cnn_forward.4} parent=0 // pred_region
    _
  $region5: #{basic_cnn_forward.4} parent=0 // pred_fallthru
    _
  // Predicated region
  $region6: #{basic_cnn_forward.4} parent=0 // pred_check
    _
  $region7: #{basic_cnn_forward.4} parent=0 // pred_check_branch
    %11 = sbr.rel (0) target = $region9
  $region8: #{basic_cnn_forward.4} parent=0 // pred_region
    _
  $region9: #{basic_cnn_forward.4} parent=0 // pred_fallthru
    _
  // Predicated region
  $region10: #{basic_cnn_forward.4} parent=0 // pred_check
    _
  $region11: #{basic_cnn_forward.4} parent=0 // pred_check_branch
    %13 = sbr.rel (0) target = $region13
  $region12: #{basic_cnn_forward.4} parent=0 // pred_region
    _
  $region13: #{basic_cnn_forward.4} parent=0 // pred_fallthru
    _
  %v15 = vld [vmem:[%s0] sm:$0xff]
  %v16 = vld [vmem:[%s0 + $0x8] sm:$0xff]
  %v17 = vld [vmem:[%s1] sm:$0xf]
  %v18 = vld [vmem:[%s1 + $0x4] sm:$0xf]
  %v19 = vld [vmem:[%s1 + $0x8] sm:$0xf]
  %v20 = vld [vmem:[%s1 + $0xc] sm:$0xf]
  %v21 = vld [vmem:[%s1 + $0x10] sm:$0xf]
  %v22 = vld [vmem:[%s1 + $0x14] sm:$0xf]
  %v23 = vld [vmem:[%s1 + $0x18] sm:$0xf]
  %v24 = vld [vmem:[%s1 + $0x1c] sm:$0xf]
  %v25 = vld [vmem:[%s1 + $0x20] sm:$0xf]
  %v26 = vld [vmem:[%s1 + $0x24] sm:$0xf]
  %v27 = vld [vmem:[%s1 + $0x28] sm:$0xf]
  %v28 = vld [vmem:[%s1 + $0x2c] sm:$0xf]
  %v29 = vld [vmem:[%s1 + $0x30] sm:$0xf]
  %v30 = vld [vmem:[%s1 + $0x34] sm:$0xf]
  %v31 = vld [vmem:[%s1 + $0x38] sm:$0xf]
  %v32 = vld [vmem:[%s1 + $0x3c] sm:$0xf]
  %v33 = vld [vmem:[%s1 + $0x40] sm:$0xf]
  %v34 = vld [vmem:[%s1 + $0x44] sm:$0xf]
  %v35 = vld [vmem:[%s1 + $0x48] sm:$0xf]
  %v36 = vld [vmem:[%s1 + $0x4c] sm:$0xf]
  %v37 = vld [vmem:[%s1 + $0x50] sm:$0xf]
  %v38 = vld [vmem:[%s1 + $0x54] sm:$0xf]
  %v39 = vld [vmem:[%s1 + $0x58] sm:$0xf]
  %v40 = vld [vmem:[%s1 + $0x5c] sm:$0xf]
  %v41 = vld [vmem:[%s1 + $0x60] sm:$0xf]
  %v42 = vld [vmem:[%s1 + $0x64] sm:$0xf]
  %v43 = vld [vmem:[%s1 + $0x68] sm:$0xf]
  %v44 = vld [vmem:[%s1 + $0x6c] sm:$0xf]
  %v45 = vld [vmem:[%s1 + $0x70] sm:$0xf]
  %v46 = vld [vmem:[%s1 + $0x74] sm:$0xf]
  %v47 = vld [vmem:[%s1 + $0x78] sm:$0xf]
  %v48 = vld [vmem:[%s1 + $0x7c] sm:$0xf]
  %v49 = vld [vmem:[%s2] sm:$0x1]
  %v51 = vlaneseq
  %v52 = vshrl.u32 %v51, 7
  %v53 = vsub.s32 0, %v52
  %v54 = vrot.slane %v49, %v53
  %v58 = vunpack.c.l.b16 %v15
  %v59 = vunpack.c.h.b16 %v15
  %v60 = vunpack.c.l.b16 %v16
  %v61 = vunpack.c.h.b16 %v16
  %v62 = vpack.c.b16 %v60, %v58
  %v63 = vpack.c.b16 %v61, %v59
  %v98 = vunpack.c.l.b16 %v17
  %v99 = vunpack.c.l.b16 %v18
  %v100 = vunpack.c.l.b16 %v19
  %v101 = vunpack.c.l.b16 %v20
  %v102 = vunpack.c.l.b16 %v21
  %v103 = vunpack.c.l.b16 %v22
  %v104 = vunpack.c.l.b16 %v23
  %v105 = vunpack.c.l.b16 %v24
  %v106 = vunpack.c.l.b16 %v25
  %v107 = vunpack.c.l.b16 %v26
  %v108 = vunpack.c.l.b16 %v27
  %v109 = vunpack.c.l.b16 %v28
  %v110 = vunpack.c.l.b16 %v29
  %v111 = vunpack.c.l.b16 %v30
  %v112 = vunpack.c.l.b16 %v31
  %v113 = vunpack.c.l.b16 %v32
  %v114 = vunpack.c.l.b16 %v33
  %v115 = vunpack.c.l.b16 %v34
  %v116 = vunpack.c.l.b16 %v35
  %v117 = vunpack.c.l.b16 %v36
  %v118 = vunpack.c.l.b16 %v37
  %v119 = vunpack.c.l.b16 %v38
  %v120 = vunpack.c.l.b16 %v39
  %v121 = vunpack.c.l.b16 %v40
  %v122 = vunpack.c.l.b16 %v41
  %v123 = vunpack.c.l.b16 %v42
  %v124 = vunpack.c.l.b16 %v43
  %v125 = vunpack.c.l.b16 %v44
  %v126 = vunpack.c.l.b16 %v45
  %v127 = vunpack.c.l.b16 %v46
  %v128 = vunpack.c.l.b16 %v47
  %v129 = vunpack.c.l.b16 %v48
  %v130 = vpack.c.b16 %v99, %v98
  %v131 = vpack.c.b16 %v101, %v100
  %v132 = vpack.c.b16 %v103, %v102
  %v133 = vpack.c.b16 %v105, %v104
  %v134 = vpack.c.b16 %v107, %v106
  %v135 = vpack.c.b16 %v109, %v108
  %v136 = vpack.c.b16 %v111, %v110
  %v137 = vpack.c.b16 %v113, %v112
  %v138 = vpack.c.b16 %v115, %v114
  %v139 = vpack.c.b16 %v117, %v116
  %v140 = vpack.c.b16 %v119, %v118
  %v141 = vpack.c.b16 %v121, %v120
  %v142 = vpack.c.b16 %v123, %v122
  %v143 = vpack.c.b16 %v125, %v124
  %v144 = vpack.c.b16 %v127, %v126
  %v145 = vpack.c.b16 %v129, %v128
  %162 = vmatprep.subr.bf16.mxu0 0
  %163 = vmatpush1.bf16.msra.mxu0 %v130
  %164 = vmatprep.subr.bf16.mxu0 0
  %165 = vmatpush1.bf16.msra.mxu0 %v131
  %166 = vmatprep.subr.bf16.mxu0 0
  %167 = vmatpush1.bf16.msra.mxu0 %v132
  %168 = vmatprep.subr.bf16.mxu0 0
  %169 = vmatpush1.bf16.msra.mxu0 %v133
  %170 = vmatprep.subr.bf16.mxu0 0
  %171 = vmatpush1.bf16.msra.mxu0 %v134
  %172 = vmatprep.subr.bf16.mxu0 0
  %173 = vmatpush1.bf16.msra.mxu0 %v135
  %174 = vmatprep.subr.bf16.mxu0 0
  %175 = vmatpush1.bf16.msra.mxu0 %v136
  %176 = vmatprep.subr.bf16.mxu0 0
  %177 = vmatpush1.bf16.msra.mxu0 %v137
  %178 = vmatprep.subr.bf16.mxu0 0
  %179 = vmatpush1.bf16.msra.mxu0 %v138
  %180 = vmatprep.subr.bf16.mxu0 0
  %181 = vmatpush1.bf16.msra.mxu0 %v139
  %182 = vmatprep.subr.bf16.mxu0 0
  %183 = vmatpush1.bf16.msra.mxu0 %v140
  %184 = vmatprep.subr.bf16.mxu0 0
  %185 = vmatpush1.bf16.msra.mxu0 %v141
  %186 = vmatprep.subr.bf16.mxu0 0
  %187 = vmatpush1.bf16.msra.mxu0 %v142
  %188 = vmatprep.subr.bf16.mxu0 0
  %189 = vmatpush1.bf16.msra.mxu0 %v143
  %190 = vmatprep.subr.bf16.mxu0 0
  %191 = vmatpush1.bf16.msra.mxu0 %v144
  %192 = vmatprep.subr.bf16.mxu0 0
  %193 = vmatpush1.bf16.msra.mxu0 %v145
  %194 = vmatprep.mubr.bf16.mxu0 %v63
  %195 = vmatmul.mubr.bf16.gmra.mrb[0].mxu0 %v62
  %v196 = vpop.f32.mrb[0].mxu0
  %v197 = vadd.f32 %v54, %v196
  %v198 = vpop.f32.mrb[0].mxu0
  %v199 = vpop.f32.mrb[0].mxu0
  %v200 = vadd.f32 %v54, %v199
  %v201 = vpop.f32.mrb[0].mxu0
  %202 = vdwg.mxu0
  %v203 = vmax.f32 %v197, 0.0
  %v204 = vmax.f32 %v200, 0.0
  %v205 = vpack.c.bf16 %v204, %v203
  %v207 = vunpack.c.l.b16 %v205
  %v208 = vunpack.c.h.b16 %v205
  %v209 = vpack.c.b16 %v207, %v207
  %v210 = vpack.c.b16 %v208, %v208
  %vm213 = vcmask 257024
  %214 = vst.msk [vmem:[%s3] sm:$0xf] %vm213, %v209
  %215 = vst.msk [vmem:[%s3 + $0x4] sm:$0xf] %vm213, %v210
  // Predicated region
  $region14: #{basic_cnn_forward.4} parent=0 // pred_check
    _
  $region15: #{basic_cnn_forward.4} parent=0 // pred_check_branch
    %217 = sbr.rel (0) target = $region17
  $region16: #{basic_cnn_forward.4} parent=0 // pred_region
    _
  $region17: #{basic_cnn_forward.4} parent=0 // pred_fallthru
    _
  // Predicated region
  $region18: #{basic_cnn_forward.4} parent=0 // pred_check
    _
  $region19: #{basic_cnn_forward.4} parent=0 // pred_check_branch
    %219 = sbr.rel (0) target = $region21
  $region20: #{basic_cnn_forward.4} parent=0 // pred_region
    _
  $region21: #{basic_cnn_forward.4} parent=0 // pred_fallthru
    _

// kernel: basic_cnn_forward.5
$region0: #{basic_cnn_forward.5}
  #allocation0 [shape = 'u32[]', space=smem, size = 0x4, offset = 0x4, fixed_abs, tag = 'smem constant byte address 0x4 - core index']
  #allocation1 [shape = 'u32[144,128]{1,0:T(1,128)}', space=vmem, size = 0x12000, scoped, tag = 'internal scratch']
  %s0 = inlined_call_operand.vmem [shape: bf16[16,128], index: 0, kind: input, shape index: {}]
  %s1 = inlined_call_operand.vmem [shape: bf16[128,256], index: 1, kind: input, shape index: {}]
  %s2 = inlined_call_operand.vmem [shape: f32[1,256], index: 2, kind: input, shape index: {}]
  %s3 = inlined_call_operand.vmem [shape: bf16[256,6], index: 3, kind: input, shape index: {}]
  %s4 = inlined_call_operand.vmem [shape: f32[1,6], index: 4, kind: input, shape index: {}]
  %s5 = inlined_call_operand.vmem [shape: f32[16,6], index: 5, kind: output, shape index: {}]
  %s6 = sld [smem:[#allocation0]]
  $region30: #{basic_cnn_forward.5} parent=0
    _
  %s8 = ssub.s32 1, %s6
  %s9 = scalar_select 0, %s8, %s6
  // Predicated region
  $region2: #{basic_cnn_forward.5} parent=0 // pred_check
    _
  $region3: #{basic_cnn_forward.5} parent=0 // pred_check_branch
    %11 = sbr.rel (0) target = $region5
  $region4: #{basic_cnn_forward.5} parent=0 // pred_region
    _
  $region5: #{basic_cnn_forward.5} parent=0 // pred_fallthru
    _
  // Predicated region
  $region6: #{basic_cnn_forward.5} parent=0 // pred_check
    _
  $region7: #{basic_cnn_forward.5} parent=0 // pred_check_branch
    %13 = sbr.rel (0) target = $region9
  $region8: #{basic_cnn_forward.5} parent=0 // pred_region
    _
  $region9: #{basic_cnn_forward.5} parent=0 // pred_fallthru
    _
  // Predicated region
  $region10: #{basic_cnn_forward.5} parent=0 // pred_check
    _
  $region11: #{basic_cnn_forward.5} parent=0 // pred_check_branch
    %15 = sbr.rel (0) target = $region13
  $region12: #{basic_cnn_forward.5} parent=0 // pred_region
    _
  $region13: #{basic_cnn_forward.5} parent=0 // pred_fallthru
    _
  // Predicated region
  $region14: #{basic_cnn_forward.5} parent=0 // pred_check
    _
  $region15: #{basic_cnn_forward.5} parent=0 // pred_check_branch
    %17 = sbr.rel (0) target = $region17
  $region16: #{basic_cnn_forward.5} parent=0 // pred_region
    _
  $region17: #{basic_cnn_forward.5} parent=0 // pred_fallthru
    _
  // Predicated region
  $region18: #{basic_cnn_forward.5} parent=0 // pred_check
    _
  $region19: #{basic_cnn_forward.5} parent=0 // pred_check_branch
    %19 = sbr.rel (0) target = $region21
  $region20: #{basic_cnn_forward.5} parent=0 // pred_region
    _
  $region21: #{basic_cnn_forward.5} parent=0 // pred_fallthru
    _
  %v21 = vld [vmem:[%s0] sm:$0xf]
  %v22 = vld [vmem:[%s0 + $0x4] sm:$0xf]
  %v23 = vld [vmem:[%s1] sm:$0xff]
  %v24 = vld [vmem:[%s1 + $0x8] sm:$0xff]
  %v25 = vld [vmem:[%s1 + $0x10] sm:$0xff]
  %v26 = vld [vmem:[%s1 + $0x18] sm:$0xff]
  %v27 = vld [vmem:[%s1 + $0x20] sm:$0xff]
  %v28 = vld [vmem:[%s1 + $0x28] sm:$0xff]
  %v29 = vld [vmem:[%s1 + $0x30] sm:$0xff]
  %v30 = vld [vmem:[%s1 + $0x38] sm:$0xff]
  %v31 = vld [vmem:[%s1 + $0x40] sm:$0xff]
  %v32 = vld [vmem:[%s1 + $0x48] sm:$0xff]
  %v33 = vld [vmem:[%s1 + $0x50] sm:$0xff]
  %v34 = vld [vmem:[%s1 + $0x58] sm:$0xff]
  %v35 = vld [vmem:[%s1 + $0x60] sm:$0xff]
  %v36 = vld [vmem:[%s1 + $0x68] sm:$0xff]
  %v37 = vld [vmem:[%s1 + $0x70] sm:$0xff]
  %v38 = vld [vmem:[%s1 + $0x78] sm:$0xff]
  %v39 = vld [vmem:[%s2] sm:$0x3]
  %v41 = vlaneseq
  %v42 = vshrl.u32 %v41, 7
  %v43 = vsub.s32 0, %v42
  %v44 = vrot.slane %v39, %v43
  %v45 = vlaneseq
  %v46 = vshrl.u32 %v45, 7
  %v47 = vsub.s32 1, %v46
  %v48 = vrot.slane %v39, %v47
  %v53 = vunpack.c.l.b16 %v21
  %v54 = vunpack.c.l.b16 %v22
  %v55 = vpack.c.b16 %v54, %v53
  %v73 = vunpack.c.l.b16 %v23
  %v74 = vunpack.c.h.b16 %v23
  %v75 = vunpack.c.l.b16 %v24
  %v76 = vunpack.c.h.b16 %v24
  %v77 = vunpack.c.l.b16 %v25
  %v78 = vunpack.c.h.b16 %v25
  %v79 = vunpack.c.l.b16 %v26
  %v80 = vunpack.c.h.b16 %v26
  %v81 = vunpack.c.l.b16 %v27
  %v82 = vunpack.c.h.b16 %v27
  %v83 = vunpack.c.l.b16 %v28
  %v84 = vunpack.c.h.b16 %v28
  %v85 = vunpack.c.l.b16 %v29
  %v86 = vunpack.c.h.b16 %v29
  %v87 = vunpack.c.l.b16 %v30
  %v88 = vunpack.c.h.b16 %v30
  %v89 = vunpack.c.l.b16 %v31
  %v90 = vunpack.c.h.b16 %v31
  %v91 = vunpack.c.l.b16 %v32
  %v92 = vunpack.c.h.b16 %v32
  %v93 = vunpack.c.l.b16 %v33
  %v94 = vunpack.c.h.b16 %v33
  %v95 = vunpack.c.l.b16 %v34
  %v96 = vunpack.c.h.b16 %v34
  %v97 = vunpack.c.l.b16 %v35
  %v98 = vunpack.c.h.b16 %v35
  %v99 = vunpack.c.l.b16 %v36
  %v100 = vunpack.c.h.b16 %v36
  %v101 = vunpack.c.l.b16 %v37
  %v102 = vunpack.c.h.b16 %v37
  %v103 = vunpack.c.l.b16 %v38
  %v104 = vunpack.c.h.b16 %v38
  %v105 = vpack.c.b16 %v75, %v73
  %v106 = vpack.c.b16 %v76, %v74
  %v107 = vpack.c.b16 %v79, %v77
  %v108 = vpack.c.b16 %v80, %v78
  %v109 = vpack.c.b16 %v83, %v81
  %v110 = vpack.c.b16 %v84, %v82
  %v111 = vpack.c.b16 %v87, %v85
  %v112 = vpack.c.b16 %v88, %v86
  %v113 = vpack.c.b16 %v91, %v89
  %v114 = vpack.c.b16 %v92, %v90
  %v115 = vpack.c.b16 %v95, %v93
  %v116 = vpack.c.b16 %v96, %v94
  %v117 = vpack.c.b16 %v99, %v97
  %v118 = vpack.c.b16 %v100, %v98
  %v119 = vpack.c.b16 %v103, %v101
  %v120 = vpack.c.b16 %v104, %v102
  %137 = vmatprep.subr.bf16.mxu0 %v106
  %138 = vmatpush1.bf16.msra.mxu0 %v105
  %139 = vmatprep.subr.bf16.mxu0 %v108
  %140 = vmatpush1.bf16.msra.mxu0 %v107
  %141 = vmatprep.subr.bf16.mxu0 %v110
  %142 = vmatpush1.bf16.msra.mxu0 %v109
  %143 = vmatprep.subr.bf16.mxu0 %v112
  %144 = vmatpush1.bf16.msra.mxu0 %v111
  %145 = vmatprep.subr.bf16.mxu0 %v114
  %146 = vmatpush1.bf16.msra.mxu0 %v113
  %147 = vmatprep.subr.bf16.mxu0 %v116
  %148 = vmatpush1.bf16.msra.mxu0 %v115
  %149 = vmatprep.subr.bf16.mxu0 %v118
  %150 = vmatpush1.bf16.msra.mxu0 %v117
  %151 = vmatprep.subr.bf16.mxu0 %v120
  %152 = vmatpush1.bf16.msra.mxu0 %v119
  %153 = vmatprep.subr.bf16.mxu0 0
  %154 = vmatpush1.bf16.msra.mxu0 0
  %155 = vmatprep.subr.bf16.mxu0 0
  %156 = vmatpush1.bf16.msra.mxu0 0
  %157 = vmatprep.subr.bf16.mxu0 0
  %158 = vmatpush1.bf16.msra.mxu0 0
  %159 = vmatprep.subr.bf16.mxu0 0
  %160 = vmatpush1.bf16.msra.mxu0 0
  %161 = vmatprep.subr.bf16.mxu0 0
  %162 = vmatpush1.bf16.msra.mxu0 0
  %163 = vmatprep.subr.bf16.mxu0 0
  %164 = vmatpush1.bf16.msra.mxu0 0
  %165 = vmatprep.subr.bf16.mxu0 0
  %166 = vmatpush1.bf16.msra.mxu0 0
  %167 = vmatprep.subr.bf16.mxu0 0
  %168 = vmatpush1.bf16.msra.mxu0 0
  %169 = vmatprep.mubr.bf16.mxu0 0
  %170 = vmatmul.mubr.bf16.gmra.mrb[0].mxu0 %v55
  %v171 = vpop.f32.mrb[0].mxu0
  %v172 = vadd.f32 %v44, %v171
  %v173 = vpop.f32.mrb[0].mxu0
  %v174 = vadd.f32 %v48, %v173
  %v175 = vpop.f32.mrb[0].mxu0
  %v176 = vadd.f32 %v44, %v175
  %v177 = vpop.f32.mrb[0].mxu0
  %v178 = vadd.f32 %v48, %v177
  %179 = vdwg.mxu0
  %v180 = vmax.f32 %v172, 0.0
  %v181 = vmax.f32 %v174, 0.0
  %v182 = vmax.f32 %v176, 0.0
  %v183 = vmax.f32 %v178, 0.0
  %v184 = vpack.c.bf16 %v182, %v180
  %v185 = vpack.c.bf16 %v183, %v181
  %v186 = vld [vmem:[%s3] sm:$0xf]
  %v187 = vld [vmem:[%s3 + $0x4] sm:$0xf]
  %v188 = vld [vmem:[%s3 + $0x8] sm:$0xf]
  %v189 = vld [vmem:[%s3 + $0xc] sm:$0xf]
  %v190 = vld [vmem:[%s3 + $0x10] sm:$0xf]
  %v191 = vld [vmem:[%s3 + $0x14] sm:$0xf]
  %v192 = vld [vmem:[%s3 + $0x18] sm:$0xf]
  %v193 = vld [vmem:[%s3 + $0x1c] sm:$0xf]
  %v194 = vld [vmem:[%s3 + $0x20] sm:$0xf]
  %v195 = vld [vmem:[%s3 + $0x24] sm:$0xf]
  %v196 = vld [vmem:[%s3 + $0x28] sm:$0xf]
  %v197 = vld [vmem:[%s3 + $0x2c] sm:$0xf]
  %v198 = vld [vmem:[%s3 + $0x30] sm:$0xf]
  %v199 = vld [vmem:[%s3 + $0x34] sm:$0xf]
  %v200 = vld [vmem:[%s3 + $0x38] sm:$0xf]
  %v201 = vld [vmem:[%s3 + $0x3c] sm:$0xf]
  %v202 = vld [vmem:[%s3 + $0x40] sm:$0xf]
  %v203 = vld [vmem:[%s3 + $0x44] sm:$0xf]
  %v204 = vld [vmem:[%s3 + $0x48] sm:$0xf]
  %v205 = vld [vmem:[%s3 + $0x4c] sm:$0xf]
  %v206 = vld [vmem:[%s3 + $0x50] sm:$0xf]
  %v207 = vld [vmem:[%s3 + $0x54] sm:$0xf]
  %v208 = vld [vmem:[%s3 + $0x58] sm:$0xf]
  %v209 = vld [vmem:[%s3 + $0x5c] sm:$0xf]
  %v210 = vld [vmem:[%s3 + $0x60] sm:$0xf]
  %v211 = vld [vmem:[%s3 + $0x64] sm:$0xf]
  %v212 = vld [vmem:[%s3 + $0x68] sm:$0xf]
  %v213 = vld [vmem:[%s3 + $0x6c] sm:$0xf]
  %v214 = vld [vmem:[%s3 + $0x70] sm:$0xf]
  %v215 = vld [vmem:[%s3 + $0x74] sm:$0xf]
  %v216 = vld [vmem:[%s3 + $0x78] sm:$0xf]
  %v217 = vld [vmem:[%s3 + $0x7c] sm:$0xf]
  %v218 = vld [vmem:[%s4] sm:$0x1]
  %v220 = vlaneseq
  %v221 = vshrl.u32 %v220, 7
  %v222 = vsub.s32 0, %v221
  %v223 = vrot.slane %v218, %v222
  %v257 = vunpack.c.l.b16 %v186
  %v258 = vunpack.c.l.b16 %v187
  %v259 = vunpack.c.l.b16 %v188
  %v260 = vunpack.c.l.b16 %v189
  %v261 = vunpack.c.l.b16 %v190
  %v262 = vunpack.c.l.b16 %v191
  %v263 = vunpack.c.l.b16 %v192
  %v264 = vunpack.c.l.b16 %v193
  %v265 = vunpack.c.l.b16 %v194
  %v266 = vunpack.c.l.b16 %v195
  %v267 = vunpack.c.l.b16 %v196
  %v268 = vunpack.c.l.b16 %v197
  %v269 = vunpack.c.l.b16 %v198
  %v270 = vunpack.c.l.b16 %v199
  %v271 = vunpack.c.l.b16 %v200
  %v272 = vunpack.c.l.b16 %v201
  %v273 = vunpack.c.l.b16 %v202
  %v274 = vunpack.c.l.b16 %v203
  %v275 = vunpack.c.l.b16 %v204
  %v276 = vunpack.c.l.b16 %v205
  %v277 = vunpack.c.l.b16 %v206
  %v278 = vunpack.c.l.b16 %v207
  %v279 = vunpack.c.l.b16 %v208
  %v280 = vunpack.c.l.b16 %v209
  %v281 = vunpack.c.l.b16 %v210
  %v282 = vunpack.c.l.b16 %v211
  %v283 = vunpack.c.l.b16 %v212
  %v284 = vunpack.c.l.b16 %v213
  %v285 = vunpack.c.l.b16 %v214
  %v286 = vunpack.c.l.b16 %v215
  %v287 = vunpack.c.l.b16 %v216
  %v288 = vunpack.c.l.b16 %v217
  %v289 = vpack.c.b16 %v258, %v257
  %v290 = vpack.c.b16 %v260, %v259
  %v291 = vpack.c.b16 %v262, %v261
  %v292 = vpack.c.b16 %v264, %v263
  %v293 = vpack.c.b16 %v266, %v265
  %v294 = vpack.c.b16 %v268, %v267
  %v295 = vpack.c.b16 %v270, %v269
  %v296 = vpack.c.b16 %v272, %v271
  %v297 = vpack.c.b16 %v274, %v273
  %v298 = vpack.c.b16 %v276, %v275
  %v299 = vpack.c.b16 %v278, %v277
  %v300 = vpack.c.b16 %v280, %v279
  %v301 = vpack.c.b16 %v282, %v281
  %v302 = vpack.c.b16 %v284, %v283
  %v303 = vpack.c.b16 %v286, %v285
  %v304 = vpack.c.b16 %v288, %v287
  %321 = vmatprep.subr.bf16.mxu0 0
  %322 = vmatpush1.bf16.msra.mxu0 %v289
  %323 = vmatprep.subr.bf16.mxu0 0
  %324 = vmatpush1.bf16.msra.mxu0 %v290
  %325 = vmatprep.subr.bf16.mxu0 0
  %326 = vmatpush1.bf16.msra.mxu0 %v291
  %327 = vmatprep.subr.bf16.mxu0 0
  %328 = vmatpush1.bf16.msra.mxu0 %v292
  %329 = vmatprep.subr.bf16.mxu0 0
  %330 = vmatpush1.bf16.msra.mxu0 %v293
  %331 = vmatprep.subr.bf16.mxu0 0
  %332 = vmatpush1.bf16.msra.mxu0 %v294
  %333 = vmatprep.subr.bf16.mxu0 0
  %334 = vmatpush1.bf16.msra.mxu0 %v295
  %335 = vmatprep.subr.bf16.mxu0 0
  %336 = vmatpush1.bf16.msra.mxu0 %v296
  %337 = vmatprep.subr.bf16.mxu0 0
  %338 = vmatpush1.bf16.msra.mxu0 %v297
  %339 = vmatprep.subr.bf16.mxu0 0
  %340 = vmatpush1.bf16.msra.mxu0 %v298
  %341 = vmatprep.subr.bf16.mxu0 0
  %342 = vmatpush1.bf16.msra.mxu0 %v299
  %343 = vmatprep.subr.bf16.mxu0 0
  %344 = vmatpush1.bf16.msra.mxu0 %v300
  %345 = vmatprep.subr.bf16.mxu0 0
  %346 = vmatpush1.bf16.msra.mxu0 %v301
  %347 = vmatprep.subr.bf16.mxu0 0
  %348 = vmatpush1.bf16.msra.mxu0 %v302
  %349 = vmatprep.subr.bf16.mxu0 0
  %350 = vmatpush1.bf16.msra.mxu0 %v303
  %351 = vmatprep.subr.bf16.mxu0 0
  %352 = vmatpush1.bf16.msra.mxu0 %v304
  %353 = vmatprep.mubr.bf16.mxu0 %v185
  %354 = vmatmul.mubr.bf16.gmra.mrb[0].mxu0 %v184
  %v355 = vpop.f32.mrb[0].mxu0
  %v356 = vadd.f32 %v223, %v355
  %v357 = vpop.f32.mrb[0].mxu0
  %v358 = vpop.f32.mrb[0].mxu0
  %v359 = vadd.f32 %v223, %v358
  %v360 = vpop.f32.mrb[0].mxu0
  %361 = vdwg.mxu0
  %vm362 = vcmask 48128
  %363 = vst.msk [vmem:[%s5] sm:$0xff] %vm362, %v356
  %364 = vst.msk [vmem:[%s5 + $0x8] sm:$0xff] %vm362, %v359
  // Predicated region
  $region22: #{basic_cnn_forward.5} parent=0 // pred_check
    _
  $region23: #{basic_cnn_forward.5} parent=0 // pred_check_branch
    %366 = sbr.rel (0) target = $region25
  $region24: #{basic_cnn_forward.5} parent=0 // pred_region
    _
  $region25: #{basic_cnn_forward.5} parent=0 // pred_fallthru
    _
  // Predicated region
  $region26: #{basic_cnn_forward.5} parent=0 // pred_check
    _
  $region27: #{basic_cnn_forward.5} parent=0 // pred_check_branch
    %368 = sbr.rel (0) target = $region29
  $region28: #{basic_cnn_forward.5} parent=0 // pred_region
    _
  $region29: #{basic_cnn_forward.5} parent=0 // pred_fallthru
    _

</llo_original>
